<compile_context>
chip_gen: v7x
topology: tpu7x:2x2x1
jax: 0.10.0
libtpu: 0.0.40
codegen_flags: <defaults>
</compile_context>

<pallas_src>
import functools

import jax
import jax.numpy as jnp
from jax.experimental import pallas as pl
from jax.experimental.pallas import tpu as pltpu


def _gather_concat_kernel(idx_ref, dense_ref, table_ref, out_ref, emb_scratch,
                          *, TB, F, E, D, V):
    # idx_ref:     [F, B_pad]   int32 SMEM (scalar prefetch), already offset into combined table
    # dense_ref:   [TB, D]      f32 VMEM block for this batch tile
    # table_ref:   [V, E]       f32 VMEM-resident combined embedding table
    # out_ref:     [TB, F*E+D]  f32 output block
    # emb_scratch: [TB, F*E]    f32 VMEM scratch for the gathered embeddings
    bt = pl.program_id(0)
    base = bt * TB

    def body(b, carry):
        for f in range(F):  # F is small and static -> unrolled
            row = idx_ref[f, base + b]
            row = jnp.clip(row, 0, V - 1)  # safety: no HW bounds check on VMEM
            emb_scratch[pl.ds(b, 1), f * E:(f + 1) * E] = table_ref[pl.ds(row, 1), :]
        return carry

    jax.lax.fori_loop(0, TB, body, 0)

    out_ref[:, : F * E] = emb_scratch[...].astype(out_ref.dtype)
    out_ref[:, F * E:] = dense_ref[...].astype(out_ref.dtype)


def build_feature_extractor_params(tables):
    """One-time setup (hoisted out of the per-call path): combined table + offsets."""
    offsets, acc = [], 0
    for t in tables:
        offsets.append(acc)
        acc += t.shape[0]
    table = jnp.concatenate(tables, axis=0)          # [V_total, E]
    return table, jnp.asarray(offsets, jnp.int32)    # per-feature row offsets


def feature_extractor(X_sparse, X_dense, table, offsets, *, max_batch_tile=256):
    """Pallas equivalent of FeatureExtractor.forward."""
    B, F = X_sparse.shape
    D = X_dense.shape[1]
    V, E = table.shape

    # Batch tile: multiple of 8 (sublane), capped; pad batch to a tile multiple.
    TB = min(max_batch_tile, ((B + 7) // 8) * 8)
    B_pad = ((B + TB - 1) // TB) * TB

    idx = X_sparse.astype(jnp.int32) + offsets[None, :]          # [B, F]
    if B_pad != B:
        idx = jnp.pad(idx, ((0, B_pad - B), (0, 0)))             # row 0 is always valid
        X_dense = jnp.pad(X_dense, ((0, B_pad - B), (0, 0)))
    idx_t = idx.T                                                # [F, B_pad]: long axis last -> compact SMEM padding

    out_dim = F * E + D
    kernel = functools.partial(_gather_concat_kernel, TB=TB, F=F, E=E, D=D, V=V)

    out = pl.pallas_call(
        kernel,
        out_shape=jax.ShapeDtypeStruct((B_pad, out_dim), X_dense.dtype),
        grid_spec=pltpu.PrefetchScalarGridSpec(
            num_scalar_prefetch=1,                               # idx_t -> SMEM
            grid=(B_pad // TB,),
            in_specs=[
                pl.BlockSpec((TB, D), lambda bt, idx_ref: (bt, 0)),   # dense: batch-tiled, pipelined
                pl.BlockSpec((V, E), lambda bt, idx_ref: (0, 0)),     # table: fetched once, resident
            ],
            out_specs=pl.BlockSpec((TB, out_dim), lambda bt, idx_ref: (bt, 0)),
            scratch_shapes=[pltpu.VMEM((TB, F * E), jnp.float32)],
        ),
        compiler_params=pltpu.CompilerParams(
            dimension_semantics=("parallel",),                   # shard batch tiles across TCs (v7x megacore)
            vmem_limit_bytes=32 * 1024 * 1024,                   # fits v5e/v6e/v7x budgets
        ),
    )(idx_t, X_dense, table)

    return out[:B] if B_pad != B else out


if __name__ == "__main__":
    # Small shapes consistent with the module:
    #   cate_fea_nuniqs = vocab sizes of the sparse features
    #   input_dim       = number of dense features
    #   emb_size        = embedding dimension
    cate_fea_nuniqs = [7, 11, 5]
    input_dim = 6
    emb_size = 4
    batch = 8

    key = jax.random.PRNGKey(0)
    k_tab, k_sparse, k_dense = jax.random.split(key, 3)

    # Deterministic parameter init (one table per categorical feature).
    tab_keys = jax.random.split(k_tab, len(cate_fea_nuniqs))
    tables = [
        jax.random.normal(tab_keys[i], (v, emb_size), dtype=jnp.float32)
        for i, v in enumerate(cate_fea_nuniqs)
    ]

    # Deterministic example inputs.
    X_sparse = jnp.stack(
        [
            jax.random.randint(jax.random.fold_in(k_sparse, i), (batch,), 0, v)
            for i, v in enumerate(cate_fea_nuniqs)
        ],
        axis=1,
    ).astype(jnp.int32)                                          # [B, F]
    X_dense = jax.random.normal(k_dense, (batch, input_dim), dtype=jnp.float32)

    # One-time parameter setup (hoisted out of the hot path).
    table, offsets = build_feature_extractor_params(tables)

    out = feature_extractor(X_sparse, X_dense, table, offsets)
    out = jax.block_until_ready(out)

    # Plain-JAX reference of the PyTorch forward pass.
    ref_embs = [tables[i][X_sparse[:, i]] for i in range(len(tables))]
    ref = jnp.concatenate(ref_embs + [X_dense], axis=1)

    assert out.shape == (batch, len(cate_fea_nuniqs) * emb_size + input_dim)
    assert jnp.allclose(out, ref, atol=1e-6, rtol=1e-6)

    print("KERNEL_OK")
</pallas_src>

<mosaic_0001>
module attributes {stable_mosaic.version = 11 : i64} {
  func.func @_gather_concat_kernel(%arg0: i32, %arg1: memref<3x8xi32, #tpu.memory_space<smem>>, %arg2: memref<8x6xf32, #tpu.memory_space<vmem>>, %arg3: memref<23x4xf32, #tpu.memory_space<vmem>>, %arg4: memref<8x18xf32, #tpu.memory_space<vmem>>, %arg5: memref<8x12xf32, #tpu.memory_space<vmem>>) attributes {dimension_semantics = [#tpu.dimension_semantics<parallel>], iteration_bounds = array<i64: 1>, scalar_prefetch = 1 : i64, scratch_operands = 1 : i64, tpu.core_type = #tpu.core_type<tc>, window_params = [{transform_indices = @transform_0, window_bounds = array<i64: 8, 6>}, {pipeline_mode = #tpu.pipeline_mode<synchronous>, transform_indices = @transform_1, window_bounds = array<i64: 23, 4>}, {transform_indices = @transform_2, window_bounds = array<i64: 8, 18>}]} {
    %c8_i32 = arith.constant 8 : i32
    %0 = arith.muli %arg0, %c8_i32 : i32
    %c0_i32 = arith.constant 0 : i32
    %c8_i32_0 = arith.constant 8 : i32
    %1 = arith.addi %c0_i32, %c8_i32_0 : i32
    %c1_i32 = arith.constant 1 : i32
    scf.for %arg6 = %c0_i32 to %1 step %c1_i32  : i32 {
      %6 = arith.addi %0, %arg6 : i32
      %c0_8 = arith.constant 0 : index
      %7 = arith.index_cast %6 : i32 to index
      %8 = memref.load %arg1[%c0_8, %7] : memref<3x8xi32, #tpu.memory_space<smem>>
      %c0_i32_9 = arith.constant 0 : i32
      %c22_i32 = arith.constant 22 : i32
      %9 = arith.maxsi %c0_i32_9, %8 : i32
      %10 = arith.minsi %c22_i32, %9 : i32
      %11 = arith.index_cast %10 : i32 to index
      %c0_10 = arith.constant 0 : index
      %12 = vector.load %arg3[%11, %c0_10] : memref<23x4xf32, #tpu.memory_space<vmem>>, vector<1x4xf32>
      %13 = arith.index_cast %arg6 : i32 to index
      %c0_11 = arith.constant 0 : index
      %14 = vector.load %arg5[%13, %c0_11] : memref<8x12xf32, #tpu.memory_space<vmem>>, vector<1x4xf32>
      tpu.vector_store %arg5[%13, %c0_11], %12 {strides = array<i32>} : memref<8x12xf32, #tpu.memory_space<vmem>>, vector<1x4xf32>,
      %15 = arith.addi %0, %arg6 : i32
      %c1 = arith.constant 1 : index
      %16 = arith.index_cast %15 : i32 to index
      %17 = memref.load %arg1[%c1, %16] : memref<3x8xi32, #tpu.memory_space<smem>>
      %c0_i32_12 = arith.constant 0 : i32
      %c22_i32_13 = arith.constant 22 : i32
      %18 = arith.maxsi %c0_i32_12, %17 : i32
      %19 = arith.minsi %c22_i32_13, %18 : i32
      %20 = arith.index_cast %19 : i32 to index
      %c0_14 = arith.constant 0 : index
      %21 = vector.load %arg3[%20, %c0_14] : memref<23x4xf32, #tpu.memory_space<vmem>>, vector<1x4xf32>
      %22 = arith.index_cast %arg6 : i32 to index
      %c4 = arith.constant 4 : index
      %23 = vector.load %arg5[%22, %c4] : memref<8x12xf32, #tpu.memory_space<vmem>>, vector<1x4xf32>
      tpu.vector_store %arg5[%22, %c4], %21 {strides = array<i32>} : memref<8x12xf32, #tpu.memory_space<vmem>>, vector<1x4xf32>,
      %24 = arith.addi %0, %arg6 : i32
      %c2 = arith.constant 2 : index
      %25 = arith.index_cast %24 : i32 to index
      %26 = memref.load %arg1[%c2, %25] : memref<3x8xi32, #tpu.memory_space<smem>>
      %c0_i32_15 = arith.constant 0 : i32
      %c22_i32_16 = arith.constant 22 : i32
      %27 = arith.maxsi %c0_i32_15, %26 : i32
      %28 = arith.minsi %c22_i32_16, %27 : i32
      %29 = arith.index_cast %28 : i32 to index
      %c0_17 = arith.constant 0 : index
      %30 = vector.load %arg3[%29, %c0_17] : memref<23x4xf32, #tpu.memory_space<vmem>>, vector<1x4xf32>
      %31 = arith.index_cast %arg6 : i32 to index
      %c8 = arith.constant 8 : index
      %32 = vector.load %arg5[%31, %c8] : memref<8x12xf32, #tpu.memory_space<vmem>>, vector<1x4xf32>
      tpu.vector_store %arg5[%31, %c8], %30 {strides = array<i32>} : memref<8x12xf32, #tpu.memory_space<vmem>>, vector<1x4xf32>,
    }
    %c8_i32_1 = arith.constant 8 : i32
    %c0 = arith.constant 0 : index
    %c0_2 = arith.constant 0 : index
    %2 = vector.load %arg5[%c0, %c0_2] : memref<8x12xf32, #tpu.memory_space<vmem>>, vector<8x12xf32>
    %c0_3 = arith.constant 0 : index
    %c0_4 = arith.constant 0 : index
    %3 = vector.load %arg4[%c0_3, %c0_4] : memref<8x18xf32, #tpu.memory_space<vmem>>, vector<8x12xf32>
    tpu.vector_store %arg4[%c0_3, %c0_4], %2 {strides = array<i32>} : memref<8x18xf32, #tpu.memory_space<vmem>>, vector<8x12xf32>,
    %c0_5 = arith.constant 0 : index
    %c0_6 = arith.constant 0 : index
    %4 = vector.load %arg2[%c0_5, %c0_6] : memref<8x6xf32, #tpu.memory_space<vmem>>, vector<8x6xf32>
    %c0_7 = arith.constant 0 : index
    %c12 = arith.constant 12 : index
    %5 = vector.load %arg4[%c0_7, %c12] : memref<8x18xf32, #tpu.memory_space<vmem>>, vector<8x6xf32>
    tpu.vector_store %arg4[%c0_7, %c12], %4 {strides = array<i32>} : memref<8x18xf32, #tpu.memory_space<vmem>>, vector<8x6xf32>,
    return
  }
  func.func @transform_0(%arg0: i32, %arg1: memref<3x8xi32, #tpu.memory_space<smem>>) -> (i32, i32) {
    %c0_i32 = arith.constant 0 : i32
    %c0_i32_0 = arith.constant 0 : i32
    return %arg0, %c0_i32 : i32, i32
  }
  func.func @transform_1(%arg0: i32, %arg1: memref<3x8xi32, #tpu.memory_space<smem>>) -> (i32, i32) {
    %c0_i32 = arith.constant 0 : i32
    %c0_i32_0 = arith.constant 0 : i32
    %c0_i32_1 = arith.constant 0 : i32
    return %c0_i32, %c0_i32_0 : i32, i32
  }
  func.func @transform_2(%arg0: i32, %arg1: memref<3x8xi32, #tpu.memory_space<smem>>) -> (i32, i32) {
    %c0_i32 = arith.constant 0 : i32
    %c0_i32_0 = arith.constant 0 : i32
    return %arg0, %c0_i32 : i32, i32
  }
}

</mosaic_0001>

<llo_original>
// kernel: tpu_custom_call.1
$region0: #{tpu_custom_call.1}
  #allocation0 [shape = 'u32[]', space=smem, size = 0x4, offset = 0x4, fixed_abs, tag = 'smem constant byte address 0x4 - core index']
  #allocation1 [shape = 'u32[144,128]{1,0:T(1,128)}', space=vmem, size = 0x12000, scoped, tag = 'internal scratch']
  #allocation2 [shape = 'f32[8,12]{1,0:T(8,128)}', space=vmem, size = 0x1000, scoped, tag = 'scratch operand']
  #allocation3 [shape = 's32[1]{0}', space=sflag, size = 0x4, scoped, tag = 'scoped memory for tpu_custom_call.1']
  #allocation4 [shape = 'u8[2048]{0}', space=smem, size = 0x800, scoped, tag = 'prefetched SMEM operand 0']
  %s0 = inlined_call_operand.vmem [shape: s32[3,8], index: 0, kind: input, shape index: {}]
  %s1 = inlined_call_operand.vmem [shape: f32[8,6], index: 1, kind: input, shape index: {}]
  %s2 = inlined_call_operand.vmem [shape: f32[23,4], index: 2, kind: input, shape index: {}]
  %s3 = inlined_call_operand.hbm [shape: f32[8,18], index: 3, kind: output, shape index: {}]
  %s4 = sld [smem:[#allocation0]]
  $region25: #{tpu_custom_call.1} parent=0
    _
  %s6 = ssub.s32 1, %s4
  %s7 = scalar_select 0, %s6, %s4
  %s8 = sshll.u32 %s0, 4
  %s9 = int_to_ptr.vmem [resolvable:$true] %s8
  %11 = dma.vmem_to_smem %s9, 64, [#allocation4], [#allocation3]
  %12 = dma.done [#allocation3], 64
  %13 = sfence
  $region1: #{tpu_custom_call.1} parent=0
    #allocation5 [shape = 'u8[4096]{0}', space=vmem, size = 0x1000, scoped, tag = 'output window, operand 0, single buffered']
    #allocation6 [shape = 's32[1]{0}', space=sflag, size = 0x4, scoped, tag = 'scoped memory for tpu_custom_call.1']
    %14 = vsyncpa [#allocation6], 0
    // Predicated region
    $region2: #{tpu_custom_call.1} parent=1 // pred_check
      _
    $region3: #{tpu_custom_call.1} parent=1 // pred_check_branch
      %16 = sbr.rel (0) target = $region5
    $region4: #{tpu_custom_call.1} parent=1 // pred_region
      _
    $region5: #{tpu_custom_call.1} parent=1 // pred_fallthru
      _
    // Predicated region
    $region6: #{tpu_custom_call.1} parent=1 // pred_check
      _
    $region7: #{tpu_custom_call.1} parent=1 // pred_check_branch
      %18 = sbr.rel (0) target = $region9
    $region8: #{tpu_custom_call.1} parent=1 // pred_region
      _
    $region9: #{tpu_custom_call.1} parent=1 // pred_fallthru
      _
    %s19 = smul.u32 0, 8
    loop: start=0, step=1, limit=8
    $region10: #{tpu_custom_call.1} parent=1 // loop_pre_header
      _
    $region11: #{tpu_custom_call.1} parent=1 // loop_header
      %s21 = sphi 0, %s25
      %p22 = scmp.ge.s32.totalorder %s21, 8
    $region12: #{tpu_custom_call.1} parent=1 // loop_header_branch
      %24 = sbr.rel (%p22) target = $region16
    $region13: #{tpu_custom_call.1} parent=1 // loop_body
      %s26 = sadd.s32 %s19, %s21
      %s27 = sld [smem:[#allocation4 + %s26]]
      %p28 = scmp.gt.s32.totalorder %s27, 0
      %s29 = scalar_select %p28, %s27, 0
      %p30 = scmp.lt.s32.totalorder %s29, 22
      %s31 = scalar_select %p30, %s29, 22
      %s32 = scalar_lea.vmem %s2, %s31
      %v33 = vld [vmem:[%s32] sm:$0x1]
      %s34 = scalar_lea.vmem [#allocation2], %s21
      %vm35 = vcmask 24576
      %36 = vst.msk [vmem:[%s34] sm:$0x1] %vm35, %v33
      %s37 = sshra.s32 %s26, 7
      %s38 = sand.u32 %s26, 127
      %s39 = sadd.s32 %s37, 1
      %s40 = smul.u32 %s39, 128
      %s41 = sshra.s32 %s26, 7
      %s42 = sand.u32 %s26, 127
      %s43 = sadd.s32 %s40, %s42
      %s44 = sld [smem:[#allocation4 + %s43]]
      %p45 = scmp.gt.s32.totalorder %s44, 0
      %s46 = scalar_select %p45, %s44, 0
      %p47 = scmp.lt.s32.totalorder %s46, 22
      %s48 = scalar_select %p47, %s46, 22
      %s49 = scalar_lea.vmem %s2, %s48
      %v50 = vld [vmem:[%s49] sm:$0x1]
      %52 = vrot.lane.b32.xlu0 %v50, 4
      %v53 = vpop.permute.xlu0 %52
      %vm55 = vcmask 57376
      %56 = vst.msk [vmem:[%s34] sm:$0x1] %vm55, %v53
      %s57 = sadd.s32 %s37, 2
      %s58 = smul.u32 %s57, 128
      %s59 = sadd.s32 %s58, %s42
      %s60 = sld [smem:[#allocation4 + %s59]]
      %p61 = scmp.gt.s32.totalorder %s60, 0
      %s62 = scalar_select %p61, %s60, 0
      %p63 = scmp.lt.s32.totalorder %s62, 22
      %s64 = scalar_select %p63, %s62, 22
      %s65 = scalar_lea.vmem %s2, %s64
      %v66 = vld [vmem:[%s65] sm:$0x1]
      %68 = vrot.lane.b32.xlu0 %v66, 8
      %v69 = vpop.permute.xlu0 %68
      %vm71 = vcmask 90176
      %72 = vst.msk [vmem:[%s34] sm:$0x1] %vm71, %v69
    $region14: #{tpu_custom_call.1} parent=1 // loop_footer
      %s25 = sadd.s32 1, %s21
    $region15: #{tpu_custom_call.1} parent=1 // loop_footer_branch
      %20 = sbr.rel target = $region11
    $region16: #{tpu_custom_call.1} parent=1 // loop_exit
      _
    %v73 = vld [vmem:[#allocation2] sm:$0xff]
    %vm74 = vcmask 97280
    %75 = vst.msk [vmem:[#allocation5] sm:$0xff] %vm74, %v73
    %v76 = vld [vmem:[%s1] sm:$0xff]
    %78 = vrot.lane.b32.xlu0 %v76, 12
    %v79 = vpop.permute.xlu0 %78
    %vm81 = vcmask 146528
    %82 = vst.msk [vmem:[#allocation5] sm:$0xff] %vm81, %v79
    // Predicated region
    $region17: #{tpu_custom_call.1} parent=1 // pred_check
      _
    $region18: #{tpu_custom_call.1} parent=1 // pred_check_branch
      %84 = sbr.rel (0) target = $region20
    $region19: #{tpu_custom_call.1} parent=1 // pred_region
      %s86 = ssub.s32 128, 128
      %87 = vsyncadd [#allocation6], %s86
      %s89 = sshll.u32 [#allocation5], 4
      %s90 = int_to_ptr.vmem [resolvable:$true] %s89
      %92 = dma.vmem_to_hbm [thread:$0]  %s90, 128, %s3, [#allocation6]
    $region20: #{tpu_custom_call.1} parent=1 // pred_fallthru
      _
    // Predicated region
    $region21: #{tpu_custom_call.1} parent=1 // pred_check
      _
    $region22: #{tpu_custom_call.1} parent=1 // pred_check_branch
      %94 = sbr.rel (0) target = $region24
    $region23: #{tpu_custom_call.1} parent=1 // pred_region
      %95 = dma.done [#allocation6], 128
    $region24: #{tpu_custom_call.1} parent=1 // pred_fallthru
      _
    %96 = vsyncpa [#allocation6], 1

</llo_original>
